<compile_context>
chip_gen: v6e
topology: v6e:2x2x1
jax: 0.10.0
libtpu: 0.0.40
codegen_flags: <defaults>
</compile_context>

<pallas_src>
import functools

import jax
import jax.numpy as jnp
from jax.experimental import pallas as pl
from jax.experimental.pallas import tpu as pltpu


def _layernorm_store(y_f32, g_ref, beta_ref, o_ref, eps):
    mean = jnp.mean(y_f32, axis=-1, keepdims=True)
    var = jnp.mean((y_f32 - mean) * (y_f32 - mean), axis=-1, keepdims=True)
    inv = jax.lax.rsqrt(var + eps)
    y = (y_f32 - mean) * inv
    y = y * g_ref[...].astype(jnp.float32) + beta_ref[...].astype(jnp.float32)
    o_ref[...] = y.astype(o_ref.dtype)


def _deberta_output_ktiled_kernel(x_ref, w_ref, b_ref, res_ref, g_ref, beta_ref,
                                  o_ref, acc_ref, *, eps):
    # x_ref:   [TM, TK]  rows x intermediate slice
    # w_ref:   [TK, H]   weight panel, canonical [K, N] layout
    # b_ref:   [1,  H]   Linear bias
    # res_ref: [TM, H]   residual rows (resident across K axis)
    # g_ref/beta_ref: [1, H]  LayerNorm affine
    # acc_ref: [TM, H]   f32 accumulator scratch
    k = pl.program_id(1)

    @pl.when(k == 0)
    def _():
        # Fold bias + residual into the accumulator init (both blocks are already in VMEM):
        # removes a zero-fill plus two (TM, H) adds from the epilogue.
        acc_ref[...] = (res_ref[...].astype(jnp.float32)
                        + b_ref[...].astype(jnp.float32))

    acc_ref[...] += jax.lax.dot_general(
        x_ref[...], w_ref[...],
        dimension_numbers=(((1,), (0,)), ((), ())),
        preferred_element_type=jnp.float32)

    @pl.when(k == pl.num_programs(1) - 1)
    def _():
        # TODO(synk): StableDropout training-mode masking not implemented (identity in eval).
        _layernorm_store(acc_ref[...], g_ref, beta_ref, o_ref, eps)


def _deberta_output_resident_kernel(x_ref, w_ref, b_ref, res_ref, g_ref, beta_ref,
                                    o_ref, *, eps):
    # Full intermediate dim in one dot: x [TM, I] @ w [I, H] -> [TM, H].
    y = jax.lax.dot_general(
        x_ref[...], w_ref[...],
        dimension_numbers=(((1,), (0,)), ((), ())),
        preferred_element_type=jnp.float32)
    y = y + b_ref[...].astype(jnp.float32) + res_ref[...].astype(jnp.float32)
    _layernorm_store(y, g_ref, beta_ref, o_ref, eps)


def _round_up(x, m):
    return ((x + m - 1) // m) * m


def _pick_tile(dim, target, align):
    """Largest multiple of `align` that divides `dim` and is <= target; else the full dim."""
    if dim <= target or dim % align != 0:
        return dim
    t = (target // align) * align
    while t >= align:
        if dim % t == 0:
            return t
        t -= align
    return dim


def _vmem_capacity_bytes():
    try:
        cap = int(pltpu.get_tpu_info().vmem_capacity_bytes)
        if cap > 0:
            return cap
    except Exception:
        pass
    return 64 << 20  # conservative fallback (v7x per-core VMEM)


def deberta_v2_output(hidden_states, input_tensor, weight, bias,
                      ln_weight, ln_bias, eps=1e-7, *,
                      tm=None, tk=1024, compute_dtype=None):
    """hidden_states: [..., I]; input_tensor: [..., H];
    weight: [H, I] (torch Linear layout); bias, ln_weight, ln_bias: [H].
    compute_dtype: optional (e.g. jnp.bfloat16) for the matmul operands; accumulation and
    LayerNorm statistics are always f32. Default (None) keeps the input dtype exactly."""
    *lead, I = hidden_states.shape
    H = weight.shape[0]
    out_dtype = hidden_states.dtype

    if compute_dtype is not None:
        hidden_states = hidden_states.astype(compute_dtype)
        weight = weight.astype(compute_dtype)

    x2d = hidden_states.reshape(-1, I)
    res2d = input_tensor.reshape(-1, H)
    M = x2d.shape[0]

    x_b = x2d.dtype.itemsize
    w_b = weight.dtype.itemsize
    r_b = res2d.dtype.itemsize
    o_b = jnp.dtype(out_dtype).itemsize

    # Row tile: amortize the weight stream over as many rows as VMEM allows.
    row_align = 16 if x_b <= 2 else 8
    if tm is None:
        tm = 1024 if x_b <= 2 else 512
    tm = max(row_align, (tm // row_align) * row_align)

    budget = int(0.70 * _vmem_capacity_bytes())

    # Contraction tile (lane-aligned divisor of I, or the full dim).
    TK = _pick_tile(I, tk, 128)

    w_total = I * H * w_b

    def footprint(TM, resident):
        small = 3 * 2 * H * 4  # bias / gamma / beta blocks, double-buffered
        if resident:
            blocks = TM * I * x_b + w_total + TM * H * (r_b + o_b)
            return 2 * blocks + small
        blocks = TM * TK * x_b + TK * H * w_b + TM * H * (r_b + o_b)
        return 2 * blocks + small + TM * H * 4  # + f32 accumulator scratch

    # Full-weight-resident path only if the (double-buffered) weight leaves ample room.
    use_resident = (2 * w_total) <= (budget // 2)

    TM = min(tm, _round_up(M, row_align))
    TM = max(row_align, (TM // row_align) * row_align)
    while TM > row_align and footprint(TM, use_resident) > budget:
        TM = max(row_align, (TM // 2 // row_align) * row_align)
    if use_resident and footprint(TM, True) > budget:
        use_resident = False  # fall back to K tiling
        while TM > row_align and footprint(TM, False) > budget:
            TM = max(row_align, (TM // 2 // row_align) * row_align)

    # Pad rows to a multiple of TM (padded rows are zeros; sliced off at the end).
    M_pad = _round_up(M, TM)
    if M_pad != M:
        x2d = jnp.pad(x2d, ((0, M_pad - M), (0, 0)))
        res2d = jnp.pad(res2d, ((0, M_pad - M), (0, 0)))

    # One-time transpose to canonical [K, N] RHS layout (done by XLA outside the kernel).
    w_t = weight.T  # [I, H]
    b2d = bias.reshape(1, H)
    g2d = ln_weight.reshape(1, H)
    beta2d = ln_bias.reshape(1, H)

    if use_resident:
        compiler_params = pltpu.CompilerParams(
            dimension_semantics=("parallel",),
            vmem_limit_bytes=budget)
        out = pl.pallas_call(
            functools.partial(_deberta_output_resident_kernel, eps=float(eps)),
            out_shape=jax.ShapeDtypeStruct((M_pad, H), out_dtype),
            grid_spec=pltpu.PrefetchScalarGridSpec(
                num_scalar_prefetch=0,
                grid=(M_pad // TM,),
                in_specs=[
                    pl.BlockSpec((TM, I), lambda i: (i, 0)),   # activations rows
                    pl.BlockSpec((I, H), lambda i: (0, 0)),    # full weight, fetched once
                    pl.BlockSpec((1, H), lambda i: (0, 0)),    # bias
                    pl.BlockSpec((TM, H), lambda i: (i, 0)),   # residual rows
                    pl.BlockSpec((1, H), lambda i: (0, 0)),    # LN gamma
                    pl.BlockSpec((1, H), lambda i: (0, 0)),    # LN beta
                ],
                out_specs=pl.BlockSpec((TM, H), lambda i: (i, 0)),
            ),
            compiler_params=compiler_params,
        )(x2d, w_t, b2d, res2d, g2d, beta2d)
    else:
        compiler_params = pltpu.CompilerParams(
            dimension_semantics=("parallel", "arbitrary"),
            vmem_limit_bytes=budget)
        grid = (M_pad // TM, I // TK)
        out = pl.pallas_call(
            functools.partial(_deberta_output_ktiled_kernel, eps=float(eps)),
            out_shape=jax.ShapeDtypeStruct((M_pad, H), out_dtype),
            grid_spec=pltpu.PrefetchScalarGridSpec(
                num_scalar_prefetch=0,
                grid=grid,
                in_specs=[
                    pl.BlockSpec((TM, TK), lambda i, k: (i, k)),  # activations rows x K slice
                    pl.BlockSpec((TK, H), lambda i, k: (k, 0)),   # weight panel [K, N]
                    pl.BlockSpec((1, H), lambda i, k: (0, 0)),    # bias
                    pl.BlockSpec((TM, H), lambda i, k: (i, 0)),   # residual rows (resident)
                    pl.BlockSpec((1, H), lambda i, k: (0, 0)),    # LN gamma
                    pl.BlockSpec((1, H), lambda i, k: (0, 0)),    # LN beta
                ],
                out_specs=pl.BlockSpec((TM, H), lambda i, k: (i, 0)),
                scratch_shapes=[pltpu.VMEM((TM, H), jnp.float32)],
            ),
            compiler_params=compiler_params,
        )(x2d, w_t, b2d, res2d, g2d, beta2d)

    out = out[:M]
    return out.reshape(*lead, H)


if __name__ == "__main__":
    # config: hidden_size=32, intermediate_size=64, layer_norm_eps=1e-7
    batch, seq, hidden, intermediate = 2, 8, 32, 64
    eps = 1e-7

    key = jax.random.PRNGKey(0)
    k_x, k_r, k_w, k_b, k_g, k_bt = jax.random.split(key, 6)

    hidden_states = jax.random.normal(k_x, (batch, seq, intermediate), dtype=jnp.float32)
    input_tensor = jax.random.normal(k_r, (batch, seq, hidden), dtype=jnp.float32)
    weight = jax.random.normal(k_w, (hidden, intermediate), dtype=jnp.float32) * 0.02
    bias = jax.random.normal(k_b, (hidden,), dtype=jnp.float32) * 0.02
    ln_weight = 1.0 + 0.1 * jax.random.normal(k_g, (hidden,), dtype=jnp.float32)
    ln_bias = 0.1 * jax.random.normal(k_bt, (hidden,), dtype=jnp.float32)

    y = deberta_v2_output(hidden_states, input_tensor, weight, bias,
                          ln_weight, ln_bias, eps)
    jax.block_until_ready(y)

    # reference in plain JAX (dropout is identity in eval mode)
    lin = hidden_states @ weight.T + bias
    pre = lin + input_tensor
    mu = pre.mean(-1, keepdims=True)
    var = ((pre - mu) ** 2).mean(-1, keepdims=True)
    ref = (pre - mu) / jnp.sqrt(var + eps) * ln_weight + ln_bias

    assert y.shape == (batch, seq, hidden)
    assert jnp.allclose(y, ref, atol=1e-5, rtol=1e-5)

    print("KERNEL_OK")
</pallas_src>

<mosaic_0001>
module attributes {stable_mosaic.version = 11 : i64} {
  func.func @_deberta_output_resident_kernel(%arg0: i32, %arg1: memref<16x64xf32, #tpu.memory_space<vmem>>, %arg2: memref<64x32xf32, #tpu.memory_space<vmem>>, %arg3: memref<1x32xf32, #tpu.memory_space<vmem>>, %arg4: memref<16x32xf32, #tpu.memory_space<vmem>>, %arg5: memref<1x32xf32, #tpu.memory_space<vmem>>, %arg6: memref<1x32xf32, #tpu.memory_space<vmem>>, %arg7: memref<16x32xf32, #tpu.memory_space<vmem>>) attributes {dimension_semantics = [#tpu.dimension_semantics<parallel>], iteration_bounds = array<i64: 1>, scalar_prefetch = 0 : i64, scratch_operands = 0 : i64, tpu.core_type = #tpu.core_type<tc>, window_params = [{transform_indices = @transform_0, window_bounds = array<i64: 16, 64>}, {pipeline_mode = #tpu.pipeline_mode<synchronous>, transform_indices = @transform_1, window_bounds = array<i64: 64, 32>}, {pipeline_mode = #tpu.pipeline_mode<synchronous>, transform_indices = @transform_2, window_bounds = array<i64: 1, 32>}, {transform_indices = @transform_3, window_bounds = array<i64: 16, 32>}, {pipeline_mode = #tpu.pipeline_mode<synchronous>, transform_indices = @transform_4, window_bounds = array<i64: 1, 32>}, {pipeline_mode = #tpu.pipeline_mode<synchronous>, transform_indices = @transform_5, window_bounds = array<i64: 1, 32>}, {transform_indices = @transform_6, window_bounds = array<i64: 16, 32>}]} {
    %c0 = arith.constant 0 : index
    %c0_0 = arith.constant 0 : index
    %0 = vector.load %arg1[%c0, %c0_0] : memref<16x64xf32, #tpu.memory_space<vmem>>, vector<16x64xf32>
    %c0_1 = arith.constant 0 : index
    %c0_2 = arith.constant 0 : index
    %1 = vector.load %arg2[%c0_1, %c0_2] : memref<64x32xf32, #tpu.memory_space<vmem>>, vector<64x32xf32>
    %cst = arith.constant dense<0.000000e+00> : vector<16x32xf32>
    %2 = tpu.matmul %0, %1, %cst {dimension_numbers = #tpu.dot_dimension_numbers<[1], [0], [0], [1], [0, 0, 1, 1], [], []>} : vector<16x64xf32>, vector<64x32xf32>, vector<16x32xf32> -> vector<16x32xf32>
    %c0_3 = arith.constant 0 : index
    %c0_4 = arith.constant 0 : index
    %3 = vector.load %arg3[%c0_3, %c0_4] : memref<1x32xf32, #tpu.memory_space<vmem>>, vector<1x32xf32>
    %4 = vector.broadcast %3 : vector<1x32xf32> to vector<16x32xf32>
    %5 = arith.addf %2, %4 : vector<16x32xf32>
    %c0_5 = arith.constant 0 : index
    %c0_6 = arith.constant 0 : index
    %6 = vector.load %arg4[%c0_5, %c0_6] : memref<16x32xf32, #tpu.memory_space<vmem>>, vector<16x32xf32>
    %7 = arith.addf %5, %6 : vector<16x32xf32>
    %cst_7 = arith.constant dense<0.000000e+00> : vector<16xf32>
    %8 = vector.multi_reduction <add>, %7, %cst_7 [1] : vector<16x32xf32> to vector<16xf32>
    %9 = vector.shape_cast %8 : vector<16xf32> to vector<16x1xf32>
    %cst_8 = arith.constant 3.200000e+01 : f32
    %10 = vector.broadcast %cst_8 : f32 to vector<16x1xf32>
    %11 = arith.divf %9, %10 : vector<16x1xf32>
    %12 = vector.broadcast %11 : vector<16x1xf32> to vector<16x32xf32>
    %13 = arith.subf %7, %12 : vector<16x32xf32>
    %14 = vector.broadcast %11 : vector<16x1xf32> to vector<16x32xf32>
    %15 = arith.subf %7, %14 : vector<16x32xf32>
    %16 = arith.mulf %13, %15 : vector<16x32xf32>
    %cst_9 = arith.constant dense<0.000000e+00> : vector<16xf32>
    %17 = vector.multi_reduction <add>, %16, %cst_9 [1] : vector<16x32xf32> to vector<16xf32>
    %18 = vector.shape_cast %17 : vector<16xf32> to vector<16x1xf32>
    %cst_10 = arith.constant 3.200000e+01 : f32
    %19 = vector.broadcast %cst_10 : f32 to vector<16x1xf32>
    %20 = arith.divf %18, %19 : vector<16x1xf32>
    %cst_11 = arith.constant 1.000000e-07 : f32
    %21 = vector.broadcast %cst_11 : f32 to vector<16x1xf32>
    %22 = arith.addf %20, %21 : vector<16x1xf32>
    %23 = math.rsqrt %22 : vector<16x1xf32>
    %24 = vector.broadcast %11 : vector<16x1xf32> to vector<16x32xf32>
    %25 = arith.subf %7, %24 : vector<16x32xf32>
    %26 = vector.broadcast %23 : vector<16x1xf32> to vector<16x32xf32>
    %27 = arith.mulf %25, %26 : vector<16x32xf32>
    %c0_12 = arith.constant 0 : index
    %c0_13 = arith.constant 0 : index
    %28 = vector.load %arg5[%c0_12, %c0_13] : memref<1x32xf32, #tpu.memory_space<vmem>>, vector<1x32xf32>
    %29 = vector.broadcast %28 : vector<1x32xf32> to vector<16x32xf32>
    %30 = arith.mulf %27, %29 : vector<16x32xf32>
    %c0_14 = arith.constant 0 : index
    %c0_15 = arith.constant 0 : index
    %31 = vector.load %arg6[%c0_14, %c0_15] : memref<1x32xf32, #tpu.memory_space<vmem>>, vector<1x32xf32>
    %32 = vector.broadcast %31 : vector<1x32xf32> to vector<16x32xf32>
    %33 = arith.addf %30, %32 : vector<16x32xf32>
    %c0_16 = arith.constant 0 : index
    %c0_17 = arith.constant 0 : index
    %34 = vector.load %arg7[%c0_16, %c0_17] : memref<16x32xf32, #tpu.memory_space<vmem>>, vector<16x32xf32>
    tpu.vector_store %arg7[%c0_16, %c0_17], %33 {strides = array<i32>} : memref<16x32xf32, #tpu.memory_space<vmem>>, vector<16x32xf32>,
    return
  }
  func.func @transform_0(%arg0: i32) -> (i32, i32) {
    %c0_i32 = arith.constant 0 : i32
    %c0_i32_0 = arith.constant 0 : i32
    return %arg0, %c0_i32 : i32, i32
  }
  func.func @transform_1(%arg0: i32) -> (i32, i32) {
    %c0_i32 = arith.constant 0 : i32
    %c0_i32_0 = arith.constant 0 : i32
    %c0_i32_1 = arith.constant 0 : i32
    return %c0_i32, %c0_i32_0 : i32, i32
  }
  func.func @transform_2(%arg0: i32) -> (i32, i32) {
    %c0_i32 = arith.constant 0 : i32
    %c0_i32_0 = arith.constant 0 : i32
    %c0_i32_1 = arith.constant 0 : i32
    return %c0_i32, %c0_i32_0 : i32, i32
  }
  func.func @transform_3(%arg0: i32) -> (i32, i32) {
    %c0_i32 = arith.constant 0 : i32
    %c0_i32_0 = arith.constant 0 : i32
    return %arg0, %c0_i32 : i32, i32
  }
  func.func @transform_4(%arg0: i32) -> (i32, i32) {
    %c0_i32 = arith.constant 0 : i32
    %c0_i32_0 = arith.constant 0 : i32
    %c0_i32_1 = arith.constant 0 : i32
    return %c0_i32, %c0_i32_0 : i32, i32
  }
  func.func @transform_5(%arg0: i32) -> (i32, i32) {
    %c0_i32 = arith.constant 0 : i32
    %c0_i32_0 = arith.constant 0 : i32
    %c0_i32_1 = arith.constant 0 : i32
    return %c0_i32, %c0_i32_0 : i32, i32
  }
  func.func @transform_6(%arg0: i32) -> (i32, i32) {
    %c0_i32 = arith.constant 0 : i32
    %c0_i32_0 = arith.constant 0 : i32
    return %arg0, %c0_i32 : i32, i32
  }
}

</mosaic_0001>

<llo_original>
// kernel: tpu_custom_call.1
$region0: #{tpu_custom_call.1}
  #allocation0 [shape = 'u32[]', space=smem, size = 0x4, offset = 0x4, fixed_abs, tag = 'smem constant byte address 0x4 - core index']
  #allocation1 [shape = 'u32[144,128]{1,0:T(1,128)}', space=vmem, size = 0x12000, scoped, tag = 'internal scratch']
  %s0 = inlined_call_operand.vmem [shape: f32[16,64], index: 0, kind: input, shape index: {}]
  %s1 = inlined_call_operand.vmem [shape: f32[64,32], index: 1, kind: input, shape index: {}]
  %s2 = inlined_call_operand.vmem [shape: f32[1,32], index: 2, kind: input, shape index: {}]
  %s3 = inlined_call_operand.vmem [shape: f32[16,32], index: 3, kind: input, shape index: {}]
  %s4 = inlined_call_operand.vmem [shape: f32[1,32], index: 4, kind: input, shape index: {}]
  %s5 = inlined_call_operand.vmem [shape: f32[1,32], index: 5, kind: input, shape index: {}]
  %s6 = inlined_call_operand.hbm [shape: f32[16,32], index: 6, kind: output, shape index: {}]
  %s7 = sld [smem:[#allocation0]]
  $region34: #{tpu_custom_call.1} parent=0
    _
  %s9 = ssub.s32 1, %s7
  %s10 = scalar_select 0, %s9, %s7
  $region1: #{tpu_custom_call.1} parent=0
    #allocation2 [shape = 'u8[8192]{0}', space=vmem, size = 0x2000, scoped, tag = 'output window, operand 0, single buffered']
    #allocation3 [shape = 's32[1]{0}', space=sflag, size = 0x4, scoped, tag = 'scoped memory for tpu_custom_call.1']
    %11 = vsyncpa [#allocation3], 0
    // Predicated region
    $region2: #{tpu_custom_call.1} parent=1 // pred_check
      _
    $region3: #{tpu_custom_call.1} parent=1 // pred_check_branch
      %13 = sbr.rel (0) target = $region5
    $region4: #{tpu_custom_call.1} parent=1 // pred_region
      _
    $region5: #{tpu_custom_call.1} parent=1 // pred_fallthru
      _
    // Predicated region
    $region6: #{tpu_custom_call.1} parent=1 // pred_check
      _
    $region7: #{tpu_custom_call.1} parent=1 // pred_check_branch
      %15 = sbr.rel (0) target = $region9
    $region8: #{tpu_custom_call.1} parent=1 // pred_region
      _
    $region9: #{tpu_custom_call.1} parent=1 // pred_fallthru
      _
    // Predicated region
    $region10: #{tpu_custom_call.1} parent=1 // pred_check
      _
    $region11: #{tpu_custom_call.1} parent=1 // pred_check_branch
      %17 = sbr.rel (0) target = $region13
    $region12: #{tpu_custom_call.1} parent=1 // pred_region
      _
    $region13: #{tpu_custom_call.1} parent=1 // pred_fallthru
      _
    // Predicated region
    $region14: #{tpu_custom_call.1} parent=1 // pred_check
      _
    $region15: #{tpu_custom_call.1} parent=1 // pred_check_branch
      %19 = sbr.rel (0) target = $region17
    $region16: #{tpu_custom_call.1} parent=1 // pred_region
      _
    $region17: #{tpu_custom_call.1} parent=1 // pred_fallthru
      _
    // Predicated region
    $region18: #{tpu_custom_call.1} parent=1 // pred_check
      _
    $region19: #{tpu_custom_call.1} parent=1 // pred_check_branch
      %21 = sbr.rel (0) target = $region21
    $region20: #{tpu_custom_call.1} parent=1 // pred_region
      _
    $region21: #{tpu_custom_call.1} parent=1 // pred_fallthru
      _
    // Predicated region
    $region22: #{tpu_custom_call.1} parent=1 // pred_check
      _
    $region23: #{tpu_custom_call.1} parent=1 // pred_check_branch
      %23 = sbr.rel (0) target = $region25
    $region24: #{tpu_custom_call.1} parent=1 // pred_region
      _
    $region25: #{tpu_custom_call.1} parent=1 // pred_fallthru
      _
    %v24 = vld [vmem:[%s0] sm:$0xff]
    %v25 = vld [vmem:[%s0 + $0x8] sm:$0xff]
    %v26 = vld [vmem:[%s1] sm:$0xff]
    %v27 = vld [vmem:[%s1 + $0x8] sm:$0xff]
    %v28 = vld [vmem:[%s1 + $0x10] sm:$0xff]
    %v29 = vld [vmem:[%s1 + $0x18] sm:$0xff]
    %v30 = vld [vmem:[%s1 + $0x20] sm:$0xff]
    %v31 = vld [vmem:[%s1 + $0x28] sm:$0xff]
    %v32 = vld [vmem:[%s1 + $0x30] sm:$0xff]
    %v33 = vld [vmem:[%s1 + $0x38] sm:$0xff]
    %v34 = vld [vmem:[%s2] sm:$0x1]
    %v36 = vlaneseq
    %v37 = vshrl.u32 %v36, 7
    %v38 = vsub.s32 0, %v37
    %v39 = vrot.slane %v34, %v38
    %vm41 = vcmask 523264
    %v43 = vsel %vm41, %v24, 0
    %v46 = vsel %vm41, %v25, 0
    %48 = vmatprep.subr.mxu0 0.0
    %49 = vmatpush1.msra.mxu0 0.0
    %50 = vmatprep.subr.mxu0 0.0
    %51 = vmatpush1.msra.mxu0 0.0
    %52 = vmatprep.subr.mxu0 0.0
    %53 = vmatpush1.msra.mxu0 0.0
    %54 = vmatprep.subr.mxu0 0.0
    %55 = vmatpush1.msra.mxu0 0.0
    %56 = vmatprep.subr.mxu0 0.0
    %57 = vmatpush1.msra.mxu0 0.0
    %58 = vmatprep.subr.mxu0 0.0
    %59 = vmatpush1.msra.mxu0 0.0
    %60 = vmatprep.subr.mxu0 0.0
    %61 = vmatpush1.msra.mxu0 0.0
    %62 = vmatprep.subr.mxu0 0.0
    %63 = vmatpush1.msra.mxu0 0.0
    %64 = vmatprep.subr.mxu0 0.0
    %65 = vmatpush1.msra.mxu0 %v33
    %66 = vmatprep.subr.mxu0 0.0
    %67 = vmatpush1.msra.mxu0 %v32
    %68 = vmatprep.subr.mxu0 0.0
    %69 = vmatpush1.msra.mxu0 %v31
    %70 = vmatprep.subr.mxu0 0.0
    %71 = vmatpush1.msra.mxu0 %v30
    %72 = vmatprep.subr.mxu0 0.0
    %73 = vmatpush1.msra.mxu0 %v29
    %74 = vmatprep.subr.mxu0 0.0
    %75 = vmatpush1.msra.mxu0 %v28
    %76 = vmatprep.subr.mxu0 0.0
    %77 = vmatpush1.msra.mxu0 %v27
    %78 = vmatprep.subr.mxu0 0.0
    %79 = vmatpush1.msra.mxu0 %v26
    %80 = vmatprep.subr.mxu0 0.0
    %81 = vmatpush2.msra.mxu0 0.0
    %82 = vmatprep.subr.mxu0 0.0
    %83 = vmatpush2.msra.mxu0 0.0
    %84 = vmatprep.subr.mxu0 0.0
    %85 = vmatpush2.msra.mxu0 0.0
    %86 = vmatprep.subr.mxu0 0.0
    %87 = vmatpush2.msra.mxu0 0.0
    %88 = vmatprep.subr.mxu0 0.0
    %89 = vmatpush2.msra.mxu0 0.0
    %90 = vmatprep.subr.mxu0 0.0
    %91 = vmatpush2.msra.mxu0 0.0
    %92 = vmatprep.subr.mxu0 0.0
    %93 = vmatpush2.msra.mxu0 0.0
    %94 = vmatprep.subr.mxu0 0.0
    %95 = vmatpush2.msra.mxu0 0.0
    %96 = vmatprep.subr.mxu0 0.0
    %97 = vmatpush2.msra.mxu0 0.0
    %98 = vmatprep.subr.mxu0 0.0
    %99 = vmatpush2.msra.mxu0 0.0
    %100 = vmatprep.subr.mxu0 0.0
    %101 = vmatpush2.msra.mxu0 0.0
    %102 = vmatprep.subr.mxu0 0.0
    %103 = vmatpush2.msra.mxu0 0.0
    %104 = vmatprep.subr.mxu0 0.0
    %105 = vmatpush2.msra.mxu0 0.0
    %106 = vmatprep.subr.mxu0 0.0
    %107 = vmatpush2.msra.mxu0 0.0
    %108 = vmatprep.subr.mxu0 0.0
    %109 = vmatpush2.msra.mxu0 0.0
    %110 = vmatprep.subr.mxu0 0.0
    %111 = vmatpush2.msra.mxu0 0.0
    %112 = vmatprep.mubr.f32.mxu0 0.0
    %113 = vmatmul.mubr.f32.gmra.mxu0 %v43
    %v114 = vpop.f32.mrf.mxu0
    %v115 = vadd.f32 %v39, %v114
    %v116 = vpop.f32.mrf.mxu0
    %117 = vmatprep.mubr.f32.mxu0 0.0
    %118 = vmatmul.mubr.f32.gmra.mxu0 %v46
    %v119 = vpop.f32.mrf.mxu0
    %v120 = vadd.f32 %v39, %v119
    %v121 = vpop.f32.mrf.mxu0
    %122 = vdwg.mxu0
    %v123 = vld [vmem:[%s3] sm:$0xff]
    %v124 = vld [vmem:[%s3 + $0x8] sm:$0xff]
    %v125 = vadd.f32 %v115, %v123
    %v126 = vadd.f32 %v120, %v124
    %vm127 = vcmask 261120
    %v128 = vsel %vm127, %v125, 0.0
    %129 = vadd.xlane.f32.xlu0 %v128
    %v130 = vpop.xlane.xlu0 %129
    %v131 = vsel %vm127, %v126, 0.0
    %132 = vadd.xlane.f32.xlu0 %v131
    %v133 = vpop.xlane.xlu0 %132
    %v134 = vrcp.pop 32.0
    %v135 = vmul.f32 %v130, %v134
    %v136 = vmul.f32 %v133, %v134
    %v137 = vsub.f32 %v125, %v135
    %v138 = vsub.f32 %v126, %v136
    %v139 = vmul.f32 %v137, %v137
    %v140 = vmul.f32 %v138, %v138
    %v141 = vsel %vm127, %v139, 0.0
    %142 = vadd.xlane.f32.xlu0 %v141
    %v143 = vpop.xlane.xlu0 %142
    %v144 = vsel %vm127, %v140, 0.0
    %145 = vadd.xlane.f32.xlu0 %v144
    %v146 = vpop.xlane.xlu0 %145
    %v147 = vmul.f32 %v143, %v134
    %v148 = vmul.f32 %v146, %v134
    %v149 = vadd.f32 %v147, 1e-07
    %v150 = vadd.f32 %v148, 1e-07
    %v151 = vrsqrt.pop %v149
    %v152 = vrsqrt.pop %v150
    %v153 = vmul.f32 %v137, %v151
    %v154 = vmul.f32 %v138, %v152
    %v155 = vld [vmem:[%s4] sm:$0x1]
    %v157 = vlaneseq
    %v158 = vshrl.u32 %v157, 7
    %v159 = vsub.s32 0, %v158
    %v160 = vrot.slane %v155, %v159
    %v162 = vmul.f32 %v153, %v160
    %v163 = vmul.f32 %v154, %v160
    %v164 = vld [vmem:[%s5] sm:$0x1]
    %v166 = vlaneseq
    %v167 = vshrl.u32 %v166, 7
    %v168 = vsub.s32 0, %v167
    %v169 = vrot.slane %v164, %v168
    %v171 = vadd.f32 %v162, %v169
    %v172 = vadd.f32 %v163, %v169
    %173 = vst.msk [vmem:[#allocation2] sm:$0xff] %vm127, %v171
    %174 = vst.msk [vmem:[#allocation2 + $0x8] sm:$0xff] %vm127, %v172
    // Predicated region
    $region26: #{tpu_custom_call.1} parent=1 // pred_check
      _
    $region27: #{tpu_custom_call.1} parent=1 // pred_check_branch
      %176 = sbr.rel (0) target = $region29
    $region28: #{tpu_custom_call.1} parent=1 // pred_region
      %s178 = ssub.s32 256, 256
      %179 = vsyncadd [#allocation3], %s178
      %s180 = sshll.u32 [#allocation2], 4
      %s181 = int_to_ptr.vmem [resolvable:$true] %s180
      %186 = dma.vmem_to_hbm [thread:$0]  %s181, 256, %s6, [#allocation3], 128, 128, 8
    $region29: #{tpu_custom_call.1} parent=1 // pred_fallthru
      _
    // Predicated region
    $region30: #{tpu_custom_call.1} parent=1 // pred_check
      _
    $region31: #{tpu_custom_call.1} parent=1 // pred_check_branch
      %188 = sbr.rel (0) target = $region33
    $region32: #{tpu_custom_call.1} parent=1 // pred_region
      %189 = dma.done [#allocation3], 256
    $region33: #{tpu_custom_call.1} parent=1 // pred_fallthru
      _
    %190 = vsyncpa [#allocation3], 1

</llo_original>
